<compile_context>
chip_gen: v7x
topology: tpu7x:2x2x1
jax: 0.10.0
libtpu: 0.0.40
codegen_flags: <defaults>
</compile_context>

<pallas_src>
import functools

import jax
import jax.numpy as jnp
from jax import lax
from jax.experimental import pallas as pl
from jax.experimental.pallas import tpu as pltpu


def self_attention_kernel(x_full_ref, x_strip_ref, w_kv_ref, b_kv_ref,
                          w_q_ref, b_q_ref, gamma_ref, out_ref,
                          k_scr, v_scr, *, c_q, c_in, compute_dtype):
    """Grid = (batch, query-strip).

    Strip 0 of each batch projects K and V(+ones) into VMEM scratch; every strip then runs
    Q-projection -> transposed scores -> softmax over keys (axis 0) -> canonical PV matmul ->
    deferred normalization + residual for its (C, block_q) output tile.
    """
    qi = pl.program_id(1)

    # ---- per-batch K / V(+ones) projection, cached across the (arbitrary) strip axis ------
    @pl.when(qi == 0)
    def _project_kv():
        x_f = x_full_ref[...].astype(compute_dtype)                      # (C, N)
        kv = lax.dot_general(                                            # canonical matmul
            w_kv_ref[...], x_f,
            dimension_numbers=(((1,), (0,)), ((), ())),
            preferred_element_type=jnp.float32) + b_kv_ref[...]          # (Cq + C + 1, N) f32
        # Cast once here (hoisted out of the strip axis).
        k_scr[...] = kv[:c_q].astype(compute_dtype)                      # (Cq, N)
        v_scr[...] = kv[c_q:].astype(compute_dtype)                      # (C + 1, N); last row = 1

    # ---- per-strip Q projection -------------------------------------------------------------
    x_s = x_strip_ref[...]                                               # (C, Tq), input dtype
    q = lax.dot_general(
        w_q_ref[...], x_s.astype(compute_dtype),
        dimension_numbers=(((1,), (0,)), ((), ())),
        preferred_element_type=jnp.float32) + b_q_ref[...]               # (Cq, Tq) f32

    # ---- attention scores, produced in transposed orientation -------------------------------
    # eT[j, i] = sum_c K[c, j] * Q[c, i].  Only the *small* (Cq, N) K operand is contracted on
    # dim 0 (folds into the MXU operand feed); the big (N, Tq) result comes out directly in the
    # orientation the PV matmul consumes -> no O(N^2) XLU transpose on the critical path.
    eT = lax.dot_general(
        k_scr[...], q.astype(compute_dtype),
        dimension_numbers=(((0,), (0,)), ((), ())),
        preferred_element_type=jnp.float32)                              # (N, Tq)

    # Numerically-stable, UNnormalized softmax over keys (axis 0 -> mostly VPU vreg-wise maxima).
    # exp kept in f32 so the identical kernel stays accurate on v5e (no bf16 EUP there).
    m = jnp.max(eT, axis=0, keepdims=True)                               # (1, Tq)
    e = jnp.exp(eT - m)                                                  # (N, Tq) f32

    # pv_aug[c, i] = sum_j V_aug[c, j] * e[j, i]  (canonical lhs-dim1 x rhs-dim0 contraction).
    # Row C (the ones row) yields the softmax denominators, already lane-aligned.
    pv_aug = lax.dot_general(
        v_scr[...], e.astype(compute_dtype),
        dimension_numbers=(((1,), (0,)), ((), ())),
        preferred_element_type=jnp.float32)                              # (C + 1, Tq)

    # Exact reciprocal when MXU operands are low precision; EUP approx in the pure-f32 path.
    approx = jnp.dtype(compute_dtype) == jnp.dtype(jnp.float32)
    inv_l = pl.reciprocal(pv_aug[c_in:c_in + 1], approx=approx)          # (1, Tq)

    gamma = gamma_ref[0, 0]
    out_ref[...] = (gamma * pv_aug[:c_in] * inv_l
                    + x_s.astype(jnp.float32)).astype(out_ref.dtype)


def _vmem_estimate_bytes(C, N, c_q, block_q, x_itemsize, out_itemsize, cd_itemsize):
    """Rough per-grid-step VMEM working-set estimate (double-buffered blocks + temps)."""
    kv_oc = c_q + C + 1
    est = 0
    est += 2 * C * N * x_itemsize                       # x_full block (double-buffered)
    est += 2 * C * block_q * x_itemsize                 # x_strip block
    est += 2 * C * block_q * out_itemsize               # output block
    est += 2 * (kv_oc + c_q) * (C + 1) * max(cd_itemsize, 4)   # weights + biases
    est += (c_q + C + 1) * N * cd_itemsize              # K / V(+ones) scratch
    est += kv_oc * N * 4                                # f32 K/V projection temp (strip 0)
    est += c_q * block_q * 4                            # q
    est += N * block_q * (4 + 4 + cd_itemsize)          # eT, exp(eT), low-precision copy
    est += (2 * C + 2) * block_q * 4                    # pv_aug + epilogue temps
    return est


def _default_block_q(C, N, c_q, x_itemsize, out_itemsize, cd_itemsize,
                     budget_bytes=40 * 1024 * 1024):
    """Largest query-strip width that is lane-dense (multiple of 128, or == N) and fits budget."""
    cands = [N] + [d for d in (2048, 1024, 512, 256, 128) if d < N and N % d == 0]
    fitting = [d for d in cands
               if _vmem_estimate_bytes(C, N, c_q, d, x_itemsize, out_itemsize,
                                       cd_itemsize) <= budget_bytes]
    return max(fitting) if fitting else min(cands)


def self_attention(x, wq, bq, wk, bk, wv, bv, gamma, *,
                   block_q=None, compute_dtype=jnp.bfloat16):
    """out = gamma * (V @ softmax(Q^T K)^T) + x, matching the PyTorch SelfAttention forward.

    x: (B, C, N); wq/wk: (C//8, C); wv: (C, C); biases 1-D; gamma: (1,).
    compute_dtype sets the MXU operand dtype (bf16 default on all TPU generations, f32
    accumulation); softmax / epilogue always run in f32.  block_q strip-mines queries.
    """
    B, C, N = x.shape
    Cq = wq.shape[0]
    KV_OC = Cq + C + 1                       # K rows + V rows + ones-row (softmax denominator)
    cd_itemsize = jnp.dtype(compute_dtype).itemsize
    out_dtype = x.dtype
    out_itemsize = jnp.dtype(out_dtype).itemsize

    if block_q is None:
        block_q = _default_block_q(C, N, Cq, x.dtype.itemsize, out_itemsize, cd_itemsize)
    assert N % block_q == 0, "block_q must divide N"
    assert block_q == N or block_q % 128 == 0, (
        "block_q must equal N or be a multiple of 128 (lane-dense blocks)")
    n_qs = N // block_q

    # Fused K|V|ones projection weights (one matmul per batch) + separate Q projection.
    w_kv = jnp.concatenate([wk, wv, jnp.zeros((1, C), wv.dtype)], axis=0).astype(compute_dtype)
    b_kv = jnp.concatenate([bk, bv, jnp.ones((1,), bv.dtype)], axis=0
                           ).astype(jnp.float32).reshape(KV_OC, 1)
    w_q = wq.astype(compute_dtype)
    b_q = bq.astype(jnp.float32).reshape(Cq, 1)
    g2 = gamma.astype(jnp.float32).reshape(1, 1)

    est = _vmem_estimate_bytes(C, N, Cq, block_q, x.dtype.itemsize, out_itemsize, cd_itemsize)
    vmem_limit = int(min(112 * 1024 * 1024, max(32 * 1024 * 1024, est * 1.3 + (2 << 20))))

    cost = pl.CostEstimate(
        flops=B * (2 * KV_OC * C * N + 2 * Cq * C * N
                   + 2 * Cq * N * N + 2 * (C + 1) * N * N + 6 * C * N),
        transcendentals=B * (N * N + N),
        bytes_accessed=(2 * x.dtype.itemsize * B * C * N       # x read twice (full + strips)
                        + out_itemsize * B * C * N
                        + cd_itemsize * (KV_OC + Cq) * C + 4 * (KV_OC + Cq + 1)),
    )

    kernel = functools.partial(self_attention_kernel,
                               c_q=Cq, c_in=C, compute_dtype=compute_dtype)

    return pl.pallas_call(
        kernel,
        out_shape=jax.ShapeDtypeStruct((B, C, N), out_dtype),
        grid_spec=pltpu.PrefetchScalarGridSpec(
            num_scalar_prefetch=0,
            grid=(B, n_qs),
            in_specs=[
                pl.BlockSpec((None, C, N), lambda b, qi: (b, 0, 0)),         # x: K/V projection
                pl.BlockSpec((None, C, block_q), lambda b, qi: (b, 0, qi)),  # x: Q strip + residual
                pl.BlockSpec((KV_OC, C), lambda b, qi: (0, 0)),              # fused W_k|W_v|0
                pl.BlockSpec((KV_OC, 1), lambda b, qi: (0, 0)),              # fused b_k|b_v|1
                pl.BlockSpec((Cq, C), lambda b, qi: (0, 0)),                 # W_q
                pl.BlockSpec((Cq, 1), lambda b, qi: (0, 0)),                 # b_q
                pl.BlockSpec(memory_space=pltpu.MemorySpace.SMEM),           # gamma (1, 1) scalar
            ],
            out_specs=pl.BlockSpec((None, C, block_q), lambda b, qi: (b, 0, qi)),
            scratch_shapes=[
                pltpu.VMEM((Cq, N), compute_dtype),        # K cache (per batch)
                pltpu.VMEM((C + 1, N), compute_dtype),     # V + ones-row cache (per batch)
            ],
        ),
        compiler_params=pltpu.CompilerParams(
            dimension_semantics=("parallel", "arbitrary"),
            vmem_limit_bytes=vmem_limit),
        cost_estimate=cost,
    )(x, x, w_kv, b_kv, w_q, b_q, g2)


def reference(x, wq, bq, wk, bk, wv, bv, gamma):
    # Pure-JAX reference mirroring the PyTorch forward.
    q = jnp.einsum("oc,bcn->bon", wq, x) + bq[None, :, None]   # (B, Cq, N)
    k = jnp.einsum("oc,bcn->bon", wk, x) + bk[None, :, None]   # (B, Cq, N)
    v = jnp.einsum("oc,bcn->bon", wv, x) + bv[None, :, None]   # (B, C,  N)
    energy = jnp.einsum("bci,bcj->bij", q, k)                  # (B, N, N)
    attn = jax.nn.softmax(energy, axis=-1)
    out = jnp.einsum("bcj,bij->bci", v, attn)                  # (B, C, N)
    return gamma[0] * out + x


if __name__ == "__main__":
    B, C, N = 2, 32, 16
    Cq = C // 8

    key = jax.random.PRNGKey(0)
    ks = jax.random.split(key, 8)
    x = jax.random.normal(ks[0], (B, C, N), jnp.float32)
    wq = jax.random.normal(ks[1], (Cq, C), jnp.float32) * 0.1
    bq = jax.random.normal(ks[2], (Cq,), jnp.float32) * 0.1
    wk = jax.random.normal(ks[3], (Cq, C), jnp.float32) * 0.1
    bk = jax.random.normal(ks[4], (Cq,), jnp.float32) * 0.1
    wv = jax.random.normal(ks[5], (C, C), jnp.float32) * 0.1
    bv = jax.random.normal(ks[6], (C,), jnp.float32) * 0.1
    # PyTorch inits gamma to zero; use a non-zero value so the attention path is exercised.
    gamma = jnp.array([0.5], jnp.float32)

    ref = reference(x, wq, bq, wk, bk, wv, bv, gamma)

    # Default path: bf16 MXU operands (all chips), f32 accumulation / softmax / epilogue.
    out = self_attention(x, wq, bq, wk, bk, wv, bv, gamma)
    out = jax.block_until_ready(out)
    assert out.shape == (B, C, N)
    assert jnp.allclose(out, ref, atol=5e-2, rtol=5e-2), "bf16 kernel mismatch vs reference"

    # Full-f32 operand path (opt-in; uses the EUP approx reciprocal).
    out_f32 = self_attention(x, wq, bq, wk, bk, wv, bv, gamma, compute_dtype=jnp.float32)
    out_f32 = jax.block_until_ready(out_f32)
    assert jnp.allclose(out_f32, ref, atol=5e-3, rtol=5e-3), "f32 kernel mismatch vs reference"

    print("KERNEL_OK")
</pallas_src>

<mosaic_0001>
module attributes {stable_mosaic.version = 11 : i64} {
  func.func @self_attention_kernel(%arg0: i32, %arg1: i32, %arg2: memref<1x32x16xf32, #tpu.memory_space<vmem>>, %arg3: memref<1x32x16xf32, #tpu.memory_space<vmem>>, %arg4: memref<37x32xbf16, #tpu.memory_space<vmem>>, %arg5: memref<37x1xf32, #tpu.memory_space<vmem>>, %arg6: memref<4x32xbf16, #tpu.memory_space<vmem>>, %arg7: memref<4x1xf32, #tpu.memory_space<vmem>>, %arg8: memref<1x1xf32, #tpu.memory_space<smem>>, %arg9: memref<1x32x16xf32, #tpu.memory_space<vmem>>, %arg10: memref<4x16xbf16, #tpu.memory_space<vmem>>, %arg11: memref<33x16xbf16, #tpu.memory_space<vmem>>) attributes {dimension_semantics = [#tpu.dimension_semantics<parallel>, #tpu.dimension_semantics<arbitrary>], iteration_bounds = array<i64: 2, 1>, scalar_prefetch = 0 : i64, scratch_operands = 2 : i64, tpu.core_type = #tpu.core_type<tc>, window_params = [{transform_indices = @transform_0, window_bounds = array<i64: 1, 32, 16>}, {transform_indices = @transform_1, window_bounds = array<i64: 1, 32, 16>}, {pipeline_mode = #tpu.pipeline_mode<synchronous>, transform_indices = @transform_2, window_bounds = array<i64: 37, 32>}, {pipeline_mode = #tpu.pipeline_mode<synchronous>, transform_indices = @transform_3, window_bounds = array<i64: 37, 1>}, {pipeline_mode = #tpu.pipeline_mode<synchronous>, transform_indices = @transform_4, window_bounds = array<i64: 4, 32>}, {pipeline_mode = #tpu.pipeline_mode<synchronous>, transform_indices = @transform_5, window_bounds = array<i64: 4, 1>}, {transform_indices = @transform_6, window_bounds = array<i64: 1, 1>}, {transform_indices = @transform_7, window_bounds = array<i64: 1, 32, 16>}]} {
    %c0_i32 = arith.constant 0 : i32
    %0 = arith.cmpi eq, %arg1, %c0_i32 : i32
    %1 = arith.extui %0 : i1 to i32
    %c0_i32_0 = arith.constant 0 : i32
    %2 = arith.cmpi ne, %1, %c0_i32_0 : i32
    scf.if %2 {
      %c0_19 = arith.constant 0 : index
      %c0_20 = arith.constant 0 : index
      %c0_21 = arith.constant 0 : index
      %34 = vector.load %arg2[%c0_19, %c0_20, %c0_21] : memref<1x32x16xf32, #tpu.memory_space<vmem>>, vector<1x32x16xf32>
      %35 = vector.shape_cast %34 : vector<1x32x16xf32> to vector<32x16xf32>
      %36 = arith.truncf %35 : vector<32x16xf32> to vector<32x16xbf16>
      %c0_22 = arith.constant 0 : index
      %c0_23 = arith.constant 0 : index
      %37 = vector.load %arg4[%c0_22, %c0_23] : memref<37x32xbf16, #tpu.memory_space<vmem>>, vector<37x32xbf16>
      %cst_24 = arith.constant dense<0.000000e+00> : vector<37x16xf32>
      %38 = tpu.matmul %37, %36, %cst_24 {dimension_numbers = #tpu.dot_dimension_numbers<[1], [0], [0], [1], [0, 0, 1, 1], [], []>} : vector<37x32xbf16>, vector<32x16xbf16>, vector<37x16xf32> -> vector<37x16xf32>
      %c0_25 = arith.constant 0 : index
      %c0_26 = arith.constant 0 : index
      %39 = vector.load %arg5[%c0_25, %c0_26] : memref<37x1xf32, #tpu.memory_space<vmem>>, vector<37x1xf32>
      %40 = vector.broadcast %39 : vector<37x1xf32> to vector<37x16xf32>
      %41 = arith.addf %38, %40 : vector<37x16xf32>
      %42 = vector.extract_strided_slice %41 {offsets = [0, 0], sizes = [4, 16], strides = [1, 1]} : vector<37x16xf32> to vector<4x16xf32>
      %43 = arith.truncf %42 : vector<4x16xf32> to vector<4x16xbf16>
      %c0_27 = arith.constant 0 : index
      %c0_28 = arith.constant 0 : index
      %44 = vector.load %arg10[%c0_27, %c0_28] : memref<4x16xbf16, #tpu.memory_space<vmem>>, vector<4x16xbf16>
      tpu.vector_store %arg10[%c0_27, %c0_28], %43 {strides = array<i32>} : memref<4x16xbf16, #tpu.memory_space<vmem>>, vector<4x16xbf16>,
      %45 = vector.extract_strided_slice %41 {offsets = [4, 0], sizes = [33, 16], strides = [1, 1]} : vector<37x16xf32> to vector<33x16xf32>
      %46 = arith.truncf %45 : vector<33x16xf32> to vector<33x16xbf16>
      %c0_29 = arith.constant 0 : index
      %c0_30 = arith.constant 0 : index
      %47 = vector.load %arg11[%c0_29, %c0_30] : memref<33x16xbf16, #tpu.memory_space<vmem>>, vector<33x16xbf16>
      tpu.vector_store %arg11[%c0_29, %c0_30], %46 {strides = array<i32>} : memref<33x16xbf16, #tpu.memory_space<vmem>>, vector<33x16xbf16>,
    } else {
    }
    %c0 = arith.constant 0 : index
    %c0_1 = arith.constant 0 : index
    %c0_2 = arith.constant 0 : index
    %3 = vector.load %arg3[%c0, %c0_1, %c0_2] : memref<1x32x16xf32, #tpu.memory_space<vmem>>, vector<1x32x16xf32>
    %4 = vector.shape_cast %3 : vector<1x32x16xf32> to vector<32x16xf32>
    %c0_3 = arith.constant 0 : index
    %c0_4 = arith.constant 0 : index
    %5 = vector.load %arg6[%c0_3, %c0_4] : memref<4x32xbf16, #tpu.memory_space<vmem>>, vector<4x32xbf16>
    %6 = arith.truncf %4 : vector<32x16xf32> to vector<32x16xbf16>
    %cst = arith.constant dense<0.000000e+00> : vector<4x16xf32>
    %7 = tpu.matmul %5, %6, %cst {dimension_numbers = #tpu.dot_dimension_numbers<[1], [0], [0], [1], [0, 0, 1, 1], [], []>} : vector<4x32xbf16>, vector<32x16xbf16>, vector<4x16xf32> -> vector<4x16xf32>
    %c0_5 = arith.constant 0 : index
    %c0_6 = arith.constant 0 : index
    %8 = vector.load %arg7[%c0_5, %c0_6] : memref<4x1xf32, #tpu.memory_space<vmem>>, vector<4x1xf32>
    %9 = vector.broadcast %8 : vector<4x1xf32> to vector<4x16xf32>
    %10 = arith.addf %7, %9 : vector<4x16xf32>
    %c0_7 = arith.constant 0 : index
    %c0_8 = arith.constant 0 : index
    %11 = vector.load %arg10[%c0_7, %c0_8] : memref<4x16xbf16, #tpu.memory_space<vmem>>, vector<4x16xbf16>
    %12 = arith.truncf %10 : vector<4x16xf32> to vector<4x16xbf16>
    %cst_9 = arith.constant dense<0.000000e+00> : vector<16x16xf32>
    %13 = tpu.matmul %11, %12, %cst_9 {dimension_numbers = #tpu.dot_dimension_numbers<[0], [0], [1], [1], [0, 1, 1, 1], [], []>} : vector<4x16xbf16>, vector<4x16xbf16>, vector<16x16xf32> -> vector<16x16xf32>
    %cst_10 = arith.constant dense<0xFF800000> : vector<16xf32>
    %14 = vector.multi_reduction <maximumf>, %13, %cst_10 [0] : vector<16x16xf32> to vector<16xf32>
    %15 = vector.shape_cast %14 : vector<16xf32> to vector<1x16xf32>
    %16 = vector.broadcast %15 : vector<1x16xf32> to vector<16x16xf32>
    %17 = arith.subf %13, %16 : vector<16x16xf32>
    %18 = math.exp %17 : vector<16x16xf32>
    %c0_11 = arith.constant 0 : index
    %c0_12 = arith.constant 0 : index
    %19 = vector.load %arg11[%c0_11, %c0_12] : memref<33x16xbf16, #tpu.memory_space<vmem>>, vector<33x16xbf16>
    %20 = arith.truncf %18 : vector<16x16xf32> to vector<16x16xbf16>
    %cst_13 = arith.constant dense<0.000000e+00> : vector<33x16xf32>
    %21 = tpu.matmul %19, %20, %cst_13 {dimension_numbers = #tpu.dot_dimension_numbers<[1], [0], [0], [1], [0, 0, 1, 1], [], []>} : vector<33x16xbf16>, vector<16x16xbf16>, vector<33x16xf32> -> vector<33x16xf32>
    %22 = vector.extract_strided_slice %21 {offsets = [32, 0], sizes = [1, 16], strides = [1, 1]} : vector<33x16xf32> to vector<1x16xf32>
    %23 = tpu.reciprocal %22 : vector<1x16xf32> -> vector<1x16xf32>
    %c0_14 = arith.constant 0 : index
    %c0_15 = arith.constant 0 : index
    %24 = memref.load %arg8[%c0_14, %c0_15] : memref<1x1xf32, #tpu.memory_space<smem>>
    %25 = vector.extract_strided_slice %21 {offsets = [0, 0], sizes = [32, 16], strides = [1, 1]} : vector<33x16xf32> to vector<32x16xf32>
    %26 = vector.broadcast %24 : f32 to vector<32x16xf32>
    %27 = arith.mulf %26, %25 : vector<32x16xf32>
    %28 = vector.broadcast %23 : vector<1x16xf32> to vector<32x16xf32>
    %29 = arith.mulf %27, %28 : vector<32x16xf32>
    %30 = arith.addf %29, %4 : vector<32x16xf32>
    %c0_16 = arith.constant 0 : index
    %c0_17 = arith.constant 0 : index
    %c0_18 = arith.constant 0 : index
    %31 = vector.load %arg9[%c0_16, %c0_17, %c0_18] : memref<1x32x16xf32, #tpu.memory_space<vmem>>, vector<1x32x16xf32>
    %32 = vector.shape_cast %31 : vector<1x32x16xf32> to vector<32x16xf32>
    %33 = vector.shape_cast %30 : vector<32x16xf32> to vector<1x32x16xf32>
    tpu.vector_store %arg9[%c0_16, %c0_17, %c0_18], %33 {strides = array<i32>} : memref<1x32x16xf32, #tpu.memory_space<vmem>>, vector<1x32x16xf32>,
    return
  }
  func.func @transform_0(%arg0: i32, %arg1: i32) -> (i32, i32, i32) {
    %c0_i32 = arith.constant 0 : i32
    %c0_i32_0 = arith.constant 0 : i32
    %c0_i32_1 = arith.constant 0 : i32
    return %arg0, %c0_i32, %c0_i32_0 : i32, i32, i32
  }
  func.func @transform_1(%arg0: i32, %arg1: i32) -> (i32, i32, i32) {
    %c0_i32 = arith.constant 0 : i32
    %c0_i32_0 = arith.constant 0 : i32
    return %arg0, %c0_i32, %arg1 : i32, i32, i32
  }
  func.func @transform_2(%arg0: i32, %arg1: i32) -> (i32, i32) {
    %c0_i32 = arith.constant 0 : i32
    %c0_i32_0 = arith.constant 0 : i32
    %c0_i32_1 = arith.constant 0 : i32
    return %c0_i32, %c0_i32_0 : i32, i32
  }
  func.func @transform_3(%arg0: i32, %arg1: i32) -> (i32, i32) {
    %c0_i32 = arith.constant 0 : i32
    %c0_i32_0 = arith.constant 0 : i32
    %c0_i32_1 = arith.constant 0 : i32
    return %c0_i32, %c0_i32_0 : i32, i32
  }
  func.func @transform_4(%arg0: i32, %arg1: i32) -> (i32, i32) {
    %c0_i32 = arith.constant 0 : i32
    %c0_i32_0 = arith.constant 0 : i32
    %c0_i32_1 = arith.constant 0 : i32
    return %c0_i32, %c0_i32_0 : i32, i32
  }
  func.func @transform_5(%arg0: i32, %arg1: i32) -> (i32, i32) {
    %c0_i32 = arith.constant 0 : i32
    %c0_i32_0 = arith.constant 0 : i32
    %c0_i32_1 = arith.constant 0 : i32
    return %c0_i32, %c0_i32_0 : i32, i32
  }
  func.func @transform_6(%arg0: i32, %arg1: i32) -> (i32, i32) {
    %c0_i32 = arith.constant 0 : i32
    %c0_i32_0 = arith.constant 0 : i32
    %c0_i32_1 = arith.constant 0 : i32
    return %c0_i32, %c0_i32_0 : i32, i32
  }
  func.func @transform_7(%arg0: i32, %arg1: i32) -> (i32, i32, i32) {
    %c0_i32 = arith.constant 0 : i32
    %c0_i32_0 = arith.constant 0 : i32
    return %arg0, %c0_i32, %arg1 : i32, i32, i32
  }
}

</mosaic_0001>

<llo_original>
// kernel: tpu_custom_call.1
$region0: #{tpu_custom_call.1}
  #allocation0 [shape = 'u32[]', space=smem, size = 0x4, offset = 0x4, fixed_abs, tag = 'smem constant byte address 0x4 - core index']
  #allocation1 [shape = 'u32[144,128]{1,0:T(1,128)}', space=vmem, size = 0x12000, scoped, tag = 'internal scratch']
  #allocation2 [shape = 'bf16[4,16]{1,0:T(4,128)(2,1)}', space=vmem, size = 0x400, scoped, tag = 'scratch operand']
  #allocation3 [shape = 'bf16[33,16]{1,0:T(8,128)(2,1)}', space=vmem, size = 0x2800, scoped, tag = 'scratch operand']
  #allocation4 [shape = 'f32[1,1]{1,0:T(1,128)S(6)}', space=smem, size = 0x200, scoped, tag = 'scoped memory for tpu_custom_call.1']
  %s0 = inlined_call_operand.vmem [shape: f32[2,32,16], index: 0, kind: input, shape index: {}]
  %s1 = inlined_call_operand.vmem [shape: f32[2,32,16], index: 1, kind: input, shape index: {}]
  %s2 = inlined_call_operand.vmem [shape: bf16[37,32], index: 2, kind: input, shape index: {}]
  %s3 = inlined_call_operand.vmem [shape: f32[37,1], index: 3, kind: input, shape index: {}]
  %s4 = inlined_call_operand.vmem [shape: bf16[4,32], index: 4, kind: input, shape index: {}]
  %s5 = inlined_call_operand.vmem [shape: f32[4,1], index: 5, kind: input, shape index: {}]
  %s6 = inlined_call_operand.<no memory space> [shape: f32[1,1], index: 6, kind: input, shape index: {}]
  %s7 = inlined_call_operand.vmem [shape: f32[2,32,16], index: 7, kind: output, shape index: {}]
  %s8 = sld [smem:[#allocation0]]
  $region65: #{tpu_custom_call.1} parent=0
    _
  %s10 = ssub.s32 1, %s8
  %s11 = scalar_select 0, %s10, %s8
  %12 = sst [smem:[#allocation4]] %s6
  loop: start=0, step=1, limit=4
  $region2: #{tpu_custom_call.1} parent=0 // loop_pre_header
    _
  $region3: #{tpu_custom_call.1} parent=0 // loop_header
    %s14 = sphi 0, %s18
    %p15 = scmp.ge.s32.totalorder %s14, 4
    %s21 = sphi 0, %s33
    %s22 = sphi 0, %s29
    %s23 = sphi 0, %s21
    %s24 = sphi 0, %s22
    %s25 = sphi 0, %s23
    %s26 = sphi 0, %s24
    %s36 = sphi 0, %s38
    %s39 = sphi 0, %s36
    %s40 = sphi 0, %s39
    %s56 = sphi 0, %s40
    %s64 = sphi 0, %s66
    %s67 = sphi 0, %s64
    %s68 = sphi 0, %s67
    %s84 = sphi 0, %s68
    %s88 = sphi 0, %s88
    %s90 = sphi 0, %s88
    %s91 = sphi 0, %s90
    %s105 = sphi 0, %s91
    %s109 = sphi 0, %s109
    %s111 = sphi 0, %s109
    %s112 = sphi 0, %s111
    %s126 = sphi 0, %s112
    %s130 = sphi 0, %s130
    %s132 = sphi 0, %s130
    %s133 = sphi 0, %s132
    %s147 = sphi 0, %s133
    %s151 = sphi 0, %s151
    %s153 = sphi 0, %s151
    %s154 = sphi 0, %s153
    %s168 = sphi 0, %s154
    %s172 = sphi 0, %s172
    %s174 = sphi 0, %s172
    %s175 = sphi 0, %s174
    %s189 = sphi 0, %s175
    %s197 = sphi 0, %s199
    %s200 = sphi 0, %s197
    %s201 = sphi 0, %s200
    %s217 = sphi 0, %s201
  $region4: #{tpu_custom_call.1} parent=0 // loop_header_branch
    %17 = sbr.rel (%p15) target = $region8
  $region5: #{tpu_custom_call.1} parent=0 // loop_body
    %s19 = ssub.s32 %s14, 1
    %s20 = ssub.s32 %s14, 2
    %s27 = sadd.s32 1, %s22
    %p28 = scmp.ge.s32.totalorder %s27, 1
    %s29 = scalar_select %p28, 0, %s27
    %s30 = sadd.s32 1, %s21
    %s31 = scalar_select %p28, %s30, %s21
    %p32 = scmp.ge.s32.totalorder %s31, 2
    %s33 = scalar_select %p32, 0, %s31
    %s34 = ssub.s32 %s21, %s33
    %p35 = scmp.eq.s32.totalorder %s34, 0
    %s37 = sadd.s32 %s36, 1
    %s38 = scalar_select %p35, %s36, %s37
    %p41 = pneg %p35
    %p42 = scmp.eq.s32.totalorder %s14, 1
    %p43 = por %p41, %p42
    %p44 = scmp.ne.s32.totalorder %s36, %s39
    %p45 = scmp.eq.s32.totalorder %s14, 0
    %p46 = por %p44, %p45
    %p47 = scmp.ne.s32.totalorder %s36, %s39
    %p48 = scmp.eq.s32.totalorder %s19, 1
    %p49 = por %p47, %p48
    %p50 = scmp.ne.s32.totalorder %s39, %s40
    %p51 = scmp.eq.s32.totalorder %s19, 0
    %p52 = por %p50, %p51
    %p53 = scmp.ne.s32.totalorder %s39, %s40
    %p54 = scmp.eq.s32.totalorder %s20, 1
    %p55 = por %p53, %p54
    %p57 = scmp.ne.s32.totalorder %s40, %s56
    %p58 = scmp.eq.s32.totalorder %s20, 0
    %p59 = por %p57, %p58
    %s60 = ssub.s32 %s21, %s33
    %s61 = ssub.s32 %s22, %s29
    %s62 = sor.u32 %s60, %s61
    %p63 = scmp.eq.s32.totalorder %s62, 0
    %s65 = sadd.s32 %s64, 1
    %s66 = scalar_select %p63, %s64, %s65
    %p69 = pneg %p63
    %p70 = scmp.eq.s32.totalorder %s14, 1
    %p71 = por %p69, %p70
    %p72 = scmp.ne.s32.totalorder %s64, %s67
    %p73 = scmp.eq.s32.totalorder %s14, 0
    %p74 = por %p72, %p73
    %p75 = scmp.ne.s32.totalorder %s64, %s67
    %p76 = scmp.eq.s32.totalorder %s19, 1
    %p77 = por %p75, %p76
    %p78 = scmp.ne.s32.totalorder %s67, %s68
    %p79 = scmp.eq.s32.totalorder %s19, 0
    %p80 = por %p78, %p79
    %p81 = scmp.ne.s32.totalorder %s67, %s68
    %p82 = scmp.eq.s32.totalorder %s20, 1
    %p83 = por %p81, %p82
    %p85 = scmp.ne.s32.totalorder %s68, %s84
    %p86 = scmp.eq.s32.totalorder %s20, 0
    %p87 = por %p85, %p86
    %s89 = sadd.s32 %s88, 1
    %p92 = scmp.eq.s32.totalorder %s14, 1
    %p93 = scmp.ne.s32.totalorder %s88, %s90
    %p94 = scmp.eq.s32.totalorder %s14, 0
    %p95 = por %p93, %p94
    %p96 = scmp.ne.s32.totalorder %s88, %s90
    %p97 = scmp.eq.s32.totalorder %s19, 1
    %p98 = por %p96, %p97
    %p99 = scmp.ne.s32.totalorder %s90, %s91
    %p100 = scmp.eq.s32.totalorder %s19, 0
    %p101 = por %p99, %p100
    %p102 = scmp.ne.s32.totalorder %s90, %s91
    %p103 = scmp.eq.s32.totalorder %s20, 1
    %p104 = por %p102, %p103
    %p106 = scmp.ne.s32.totalorder %s91, %s105
    %p107 = scmp.eq.s32.totalorder %s20, 0
    %p108 = por %p106, %p107
    %s110 = sadd.s32 %s109, 1
    %p113 = scmp.eq.s32.totalorder %s14, 1
    %p114 = scmp.ne.s32.totalorder %s109, %s111
    %p115 = scmp.eq.s32.totalorder %s14, 0
    %p116 = por %p114, %p115
    %p117 = scmp.ne.s32.totalorder %s109, %s111
    %p118 = scmp.eq.s32.totalorder %s19, 1
    %p119 = por %p117, %p118
    %p120 = scmp.ne.s32.totalorder %s111, %s112
    %p121 = scmp.eq.s32.totalorder %s19, 0
    %p122 = por %p120, %p121
    %p123 = scmp.ne.s32.totalorder %s111, %s112
    %p124 = scmp.eq.s32.totalorder %s20, 1
    %p125 = por %p123, %p124
    %p127 = scmp.ne.s32.totalorder %s112, %s126
    %p128 = scmp.eq.s32.totalorder %s20, 0
    %p129 = por %p127, %p128
    %s131 = sadd.s32 %s130, 1
    %p134 = scmp.eq.s32.totalorder %s14, 1
    %p135 = scmp.ne.s32.totalorder %s130, %s132
    %p136 = scmp.eq.s32.totalorder %s14, 0
    %p137 = por %p135, %p136
    %p138 = scmp.ne.s32.totalorder %s130, %s132
    %p139 = scmp.eq.s32.totalorder %s19, 1
    %p140 = por %p138, %p139
    %p141 = scmp.ne.s32.totalorder %s132, %s133
    %p142 = scmp.eq.s32.totalorder %s19, 0
    %p143 = por %p141, %p142
    %p144 = scmp.ne.s32.totalorder %s132, %s133
    %p145 = scmp.eq.s32.totalorder %s20, 1
    %p146 = por %p144, %p145
    %p148 = scmp.ne.s32.totalorder %s133, %s147
    %p149 = scmp.eq.s32.totalorder %s20, 0
    %p150 = por %p148, %p149
    %s152 = sadd.s32 %s151, 1
    %p155 = scmp.eq.s32.totalorder %s14, 1
    %p156 = scmp.ne.s32.totalorder %s151, %s153
    %p157 = scmp.eq.s32.totalorder %s14, 0
    %p158 = por %p156, %p157
    %p159 = scmp.ne.s32.totalorder %s151, %s153
    %p160 = scmp.eq.s32.totalorder %s19, 1
    %p161 = por %p159, %p160
    %p162 = scmp.ne.s32.totalorder %s153, %s154
    %p163 = scmp.eq.s32.totalorder %s19, 0
    %p164 = por %p162, %p163
    %p165 = scmp.ne.s32.totalorder %s153, %s154
    %p166 = scmp.eq.s32.totalorder %s20, 1
    %p167 = por %p165, %p166
    %p169 = scmp.ne.s32.totalorder %s154, %s168
    %p170 = scmp.eq.s32.totalorder %s20, 0
    %p171 = por %p169, %p170
    %s173 = sadd.s32 %s172, 1
    %p176 = scmp.eq.s32.totalorder %s14, 1
    %p177 = scmp.ne.s32.totalorder %s172, %s174
    %p178 = scmp.eq.s32.totalorder %s14, 0
    %p179 = por %p177, %p178
    %p180 = scmp.ne.s32.totalorder %s172, %s174
    %p181 = scmp.eq.s32.totalorder %s19, 1
    %p182 = por %p180, %p181
    %p183 = scmp.ne.s32.totalorder %s174, %s175
    %p184 = scmp.eq.s32.totalorder %s19, 0
    %p185 = por %p183, %p184
    %p186 = scmp.ne.s32.totalorder %s174, %s175
    %p187 = scmp.eq.s32.totalorder %s20, 1
    %p188 = por %p186, %p187
    %p190 = scmp.ne.s32.totalorder %s175, %s189
    %p191 = scmp.eq.s32.totalorder %s20, 0
    %p192 = por %p190, %p191
    %s193 = ssub.s32 %s21, %s33
    %s194 = ssub.s32 %s22, %s29
    %s195 = sor.u32 %s193, %s194
    %p196 = scmp.eq.s32.totalorder %s195, 0
    %s198 = sadd.s32 %s197, 1
    %s199 = scalar_select %p196, %s197, %s198
    %p202 = pneg %p196
    %p203 = scmp.eq.s32.totalorder %s14, 1
    %p204 = por %p202, %p203
    %p205 = scmp.ne.s32.totalorder %s197, %s200
    %p206 = scmp.eq.s32.totalorder %s14, 0
    %p207 = por %p205, %p206
    %p208 = scmp.ne.s32.totalorder %s197, %s200
    %p209 = scmp.eq.s32.totalorder %s19, 1
    %p210 = por %p208, %p209
    %p211 = scmp.ne.s32.totalorder %s200, %s201
    %p212 = scmp.eq.s32.totalorder %s19, 0
    %p213 = por %p211, %p212
    %p214 = scmp.ne.s32.totalorder %s200, %s201
    %p215 = scmp.eq.s32.totalorder %s20, 1
    %p216 = por %p214, %p215
    %p218 = scmp.ne.s32.totalorder %s201, %s217
    %p219 = scmp.eq.s32.totalorder %s20, 0
    %p220 = por %p218, %p219
    %p221 = scmp.le.s32.totalorder 1, %s14
    %p222 = scmp.lt.s32.totalorder %s14, 3
    %p223 = pnand %p221, %p222
    %p224 = pneg %p223
    // Predicated region
    $region9: #{tpu_custom_call.1} parent=5 // pred_check
      _
    $region10: #{tpu_custom_call.1} parent=5 // pred_check_branch
      %226 = sbr.rel (%p223) target = $region12
    $region11: #{tpu_custom_call.1} parent=5 // pred_region
      %s227 = ssub.s32 %s14, 1
      // Predicated region
      $region13: #{tpu_custom_call.1} parent=11 // pred_check
        %p228 = pneg %p101
      $region14: #{tpu_custom_call.1} parent=11 // pred_check_branch
        %230 = sbr.rel (%p228) target = $region16
      $region15: #{tpu_custom_call.1} parent=11 // pred_region
        _
      $region16: #{tpu_custom_call.1} parent=11 // pred_fallthru
        _
      // Predicated region
      $region17: #{tpu_custom_call.1} parent=11 // pred_check
        %p231 = pneg %p122
      $region18: #{tpu_custom_call.1} parent=11 // pred_check_branch
        %233 = sbr.rel (%p231) target = $region20
      $region19: #{tpu_custom_call.1} parent=11 // pred_region
        _
      $region20: #{tpu_custom_call.1} parent=11 // pred_fallthru
        _
      // Predicated region
      $region21: #{tpu_custom_call.1} parent=11 // pred_check
        %p234 = pneg %p143
      $region22: #{tpu_custom_call.1} parent=11 // pred_check_branch
        %236 = sbr.rel (%p234) target = $region24
      $region23: #{tpu_custom_call.1} parent=11 // pred_region
        _
      $region24: #{tpu_custom_call.1} parent=11 // pred_fallthru
        _
      // Predicated region
      $region25: #{tpu_custom_call.1} parent=11 // pred_check
        %p237 = pneg %p164
      $region26: #{tpu_custom_call.1} parent=11 // pred_check_branch
        %239 = sbr.rel (%p237) target = $region28
      $region27: #{tpu_custom_call.1} parent=11 // pred_region
        _
      $region28: #{tpu_custom_call.1} parent=11 // pred_fallthru
        _
      // Predicated region
      $region29: #{tpu_custom_call.1} parent=11 // pred_check
        %p240 = pneg %p185
      $region30: #{tpu_custom_call.1} parent=11 // pred_check_branch
        %242 = sbr.rel (%p240) target = $region32
      $region31: #{tpu_custom_call.1} parent=11 // pred_region
        _
      $region32: #{tpu_custom_call.1} parent=11 // pred_fallthru
        _
    $region12: #{tpu_custom_call.1} parent=5 // pred_fallthru
      _
    %p243 = scmp.lt.s32.totalorder %s14, 2
    // Predicated region
    $region33: #{tpu_custom_call.1} parent=5 // pred_check
      %p244 = pneg %p243
    $region34: #{tpu_custom_call.1} parent=5 // pred_check_branch
      %246 = sbr.rel (%p244) target = $region36
    $region35: #{tpu_custom_call.1} parent=5 // pred_region
      // Predicated region
      $region37: #{tpu_custom_call.1} parent=35 // pred_check
        %p247 = pneg %p46
      $region38: #{tpu_custom_call.1} parent=35 // pred_check_branch
        %249 = sbr.rel (%p247) target = $region40
      $region39: #{tpu_custom_call.1} parent=35 // pred_region
        %p250 = scmp.lt.s32.totalorder %s21, 1
        %s251 = scalar_select %p250, %s21, 1
        %s252 = smul.addr %s251, 4
        %s253 = smul.addr %s252, 8
        %s254 = scalar_lea.vmem %s0, %s253
      $region40: #{tpu_custom_call.1} parent=35 // pred_fallthru
        _
      // Predicated region
      $region41: #{tpu_custom_call.1} parent=35 // pred_check
        %p255 = pneg %p74
      $region42: #{tpu_custom_call.1} parent=35 // pred_check_branch
        %257 = sbr.rel (%p255) target = $region44
      $region43: #{tpu_custom_call.1} parent=35 // pred_region
        %p258 = scmp.lt.s32.totalorder %s21, 1
        %s259 = scalar_select %p258, %s21, 1
        %p260 = scmp.lt.s32.totalorder %s22, 0
        %s261 = scalar_select %p260, %s22, 0
        %s262 = smul.addr %s259, 4
        %s263 = sadd.s32 %s261, %s262
        %s264 = smul.addr %s263, 8
        %s265 = scalar_lea.vmem %s1, %s264
      $region44: #{tpu_custom_call.1} parent=35 // pred_fallthru
        _
    $region36: #{tpu_custom_call.1} parent=5 // pred_fallthru
      _
    %p266 = scmp.le.s32.totalorder 1, %s14
    %p267 = scmp.lt.s32.totalorder %s14, 3
    %p268 = pnand %p266, %p267
    %p269 = pneg %p268
    // Predicated region
    $region45: #{tpu_custom_call.1} parent=5 // pred_check
      _
    $region46: #{tpu_custom_call.1} parent=5 // pred_check_branch
      %271 = sbr.rel (%p268) target = $region48
    $region47: #{tpu_custom_call.1} parent=5 // pred_region
      %s272 = ssub.s32 %s14, 1
      %p273 = scmp.lt.s32.totalorder %s23, 1
      %s274 = scalar_select %p273, %s23, 1
      %s275 = smul.addr %s274, 4
      %s276 = smul.addr %s275, 8
      %s277 = scalar_lea.vmem %s0, %s276
      %p278 = pneg %p52
      %p279 = pneg %p49
      %p280 = scmp.lt.s32.totalorder %s23, 1
      %s281 = scalar_select %p280, %s23, 1
      %p282 = scmp.lt.s32.totalorder %s24, 0
      %s283 = scalar_select %p282, %s24, 0
      %s284 = smul.addr %s281, 4
      %s285 = sadd.s32 %s283, %s284
      %s286 = smul.addr %s285, 8
      %s287 = scalar_lea.vmem %s1, %s286
      %p288 = pneg %p80
      %p289 = pneg %p77
      %p290 = pneg %p101
      %p291 = pneg %p98
      %p292 = pneg %p122
      %p293 = pneg %p119
      %p294 = pneg %p143
      %p295 = pneg %p140
      %p296 = pneg %p164
      %p297 = pneg %p161
      %p298 = pneg %p185
      %p299 = pneg %p182
      %p300 = pneg %p213
      %p301 = pneg %p210
      %p302 = scmp.lt.s32.totalorder %s23, 1
      %s303 = scalar_select %p302, %s23, 1
      %p304 = scmp.lt.s32.totalorder %s24, 0
      %s305 = scalar_select %p304, %s24, 0
      %s306 = smul.addr %s303, 4
      %s307 = sadd.s32 %s305, %s306
      %s308 = smul.addr %s307, 8
      %s309 = scalar_lea.vmem %s7, %s308
      %p310 = scmp.lt.s32.totalorder %s23, 1
      %s311 = scalar_select %p310, %s23, 1
      %s312 = smul.addr %s311, 4
      %s313 = smul.addr %s312, 8
      %s314 = scalar_lea.vmem %s0, %s313
      %p315 = scmp.lt.s32.totalorder %s23, 1
      %s316 = scalar_select %p315, %s23, 1
      %p317 = scmp.lt.s32.totalorder %s24, 0
      %s318 = scalar_select %p317, %s24, 0
      %s319 = smul.addr %s316, 4
      %s320 = sadd.s32 %s318, %s319
      %s321 = smul.addr %s320, 8
      %s322 = scalar_lea.vmem %s1, %s321
      %p323 = scmp.lt.s32.totalorder %s23, 1
      %s324 = scalar_select %p323, %s23, 1
      %p325 = scmp.lt.s32.totalorder %s24, 0
      %s326 = scalar_select %p325, %s24, 0
      %s327 = smul.addr %s324, 4
      %s328 = sadd.s32 %s326, %s327
      %s329 = smul.addr %s328, 8
      %s330 = scalar_lea.vmem %s7, %s329
      %p332 = scmp.eq.s32.totalorder %s24, 0
      // Predicated region
      $region49: #{tpu_custom_call.1} parent=47 // pred_check
        %p333 = pneg %p332
      $region50: #{tpu_custom_call.1} parent=47 // pred_check_branch
        %335 = sbr.rel (%p333) target = $region52
      $region51: #{tpu_custom_call.1} parent=47 // pred_region
        %v336 = vld [vmem:[%s314] sm:$0xff]
        %v337 = vld [vmem:[%s314 + $0x8] sm:$0xff]
        %v338 = vld [vmem:[%s314 + $0x10] sm:$0xff]
        %v339 = vld [vmem:[%s314 + $0x18] sm:$0xff]
        %v340 = vpack.c.bf16 %v337, %v336
        %v341 = vpack.c.bf16 %v339, %v338
        %v342 = vld [vmem:[%s2] sm:$0xf]
        %v343 = vld [vmem:[%s2 + $0x4] sm:$0xf]
        %v344 = vld [vmem:[%s2 + $0x8] sm:$0xf]
        %v345 = vld [vmem:[%s2 + $0xc] sm:$0xf]
        %v346 = vld [vmem:[%s2 + $0x10] sm:$0x7]
        %v347 = vld [vmem:[%s3] sm:$0xff]
        %v348 = vld [vmem:[%s3 + $0x8] sm:$0xff]
        %v349 = vld [vmem:[%s3 + $0x10] sm:$0xff]
        %v350 = vld [vmem:[%s3 + $0x18] sm:$0xff]
        %v351 = vld [vmem:[%s3 + $0x20] sm:$0x1f]
        %353 = vset.pattern.permute.xlu0 0
        %354 = vperm.xlu0 %353, %v347
        %v355 = vpop.permute.xlu0 %354
        %358 = vset.pattern.permute.xlu0 0
        %359 = vperm.xlu0 %358, %v348
        %v360 = vpop.permute.xlu0 %359
        %363 = vset.pattern.permute.xlu0 0
        %364 = vperm.xlu0 %363, %v349
        %v365 = vpop.permute.xlu0 %364
        %368 = vset.pattern.permute.xlu0 0
        %369 = vperm.xlu0 %368, %v350
        %v370 = vpop.permute.xlu0 %369
        %373 = vset.pattern.permute.xlu0 0
        %374 = vperm.xlu0 %373, %v351
        %v375 = vpop.permute.xlu0 %374
        %v382 = vunpack.c.l.b16 %v342
        %v383 = vunpack.c.l.b16 %v343
        %v384 = vunpack.c.l.b16 %v344
        %v385 = vunpack.c.l.b16 %v345
        %v386 = vunpack.c.l.b16 %v346
        %v387 = vpack.c.b16 %v383, %v382
        %v388 = vpack.c.b16 %v385, %v384
        %v389 = vpack.c.b16 %v386, %v386
        %vm390 = vcmask 261120
        %v392 = vsel %vm390, %v387, 0
        %v395 = vsel %vm390, %v388, 0
        %v398 = vsel %vm390, %v389, 0
        %400 = vmatprep.subr.bf16.mxu0 0
        %401 = vmatpush1.bf16.msra.mxu0 %v340
        %402 = vmatprep.subr.bf16.mxu0 0
        %403 = vmatpush1.bf16.msra.mxu0 %v341
        %404 = vmatprep.subr.bf16.mxu0 0
        %405 = vmatpush1.bf16.msra.mxu0 0
        %406 = vmatprep.subr.bf16.mxu0 0
        %407 = vmatpush1.bf16.msra.mxu0 0
        %408 = vmatprep.subr.bf16.mxu0 0
        %409 = vmatpush1.bf16.msra.mxu0 0
        %410 = vmatprep.subr.bf16.mxu0 0
        %411 = vmatpush1.bf16.msra.mxu0 0
        %412 = vmatprep.subr.bf16.mxu0 0
        %413 = vmatpush1.bf16.msra.mxu0 0
        %414 = vmatprep.subr.bf16.mxu0 0
        %415 = vmatpush1.bf16.msra.mxu0 0
        %416 = vmatprep.subr.bf16.mxu0 0
        %417 = vmatpush1.bf16.msra.mxu0 0
        %418 = vmatprep.subr.bf16.mxu0 0
        %419 = vmatpush1.bf16.msra.mxu0 0
        %420 = vmatprep.subr.bf16.mxu0 0
        %421 = vmatpush1.bf16.msra.mxu0 0
        %422 = vmatprep.subr.bf16.mxu0 0
        %423 = vmatpush1.bf16.msra.mxu0 0
        %424 = vmatprep.subr.bf16.mxu0 0
        %425 = vmatpush1.bf16.msra.mxu0 0
        %426 = vmatprep.subr.bf16.mxu0 0
        %427 = vmatpush1.bf16.msra.mxu0 0
        %428 = vmatprep.subr.bf16.mxu0 0
        %429 = vmatpush1.bf16.msra.mxu0 0
        %430 = vmatprep.subr.bf16.mxu0 0
        %431 = vmatpush1.bf16.msra.mxu0 0
        %432 = vmatprep.mubr.bf16.mxu0 0
        %433 = vmatmul.mubr.bf16.gmra.mrb[0].mxu0 %v392
        %v434 = vpop.f32.mrb[0].mxu0
        %v435 = vadd.f32 %v355, %v434
        %v436 = vpop.f32.mrb[0].mxu0
        %v437 = vpop.f32.mrb[0].mxu0
        %v438 = vadd.f32 %v360, %v437
        %v439 = vpop.f32.mrb[0].mxu0
        %440 = vmatprep.mubr.bf16.mxu0 0
        %441 = vmatmul.mubr.bf16.gmra.mrb[0].mxu0 %v395
        %v442 = vpop.f32.mrb[0].mxu0
        %v443 = vadd.f32 %v365, %v442
        %v444 = vpop.f32.mrb[0].mxu0
        %v445 = vpop.f32.mrb[0].mxu0
        %v446 = vadd.f32 %v370, %v445
        %v447 = vpop.f32.mrb[0].mxu0
        %448 = vmatprep.mubr.bf16.mxu0 0
        %449 = vmatmul.mubr.bf16.gmra.mrb[0].mxu0 %v398
        %v450 = vpop.f32.mrb[0].mxu0
        %v451 = vadd.f32 %v375, %v450
        %v452 = vpop.f32.mrb[0].mxu0
        %v453 = vpop.f32.mrb[0].mxu0
        %v454 = vpop.f32.mrb[0].mxu0
        %455 = vdwg.mxu0
        %v456 = vpack.c.bf16 %v435, %v435
        %vm457 = vcmask 123904
        %458 = vst.msk [vmem:[#allocation2] sm:$0x3] %vm457, %v456
        %v459 = vpack.c.bf16 %v438, %v435
        %v460 = vpack.c.bf16 %v446, %v443
        %v461 = vpack.c.bf16 %v451, %v451
        %v465 = vunpack.c.l.b16 %v459
        %v466 = vunpack.c.h.b16 %v459
        %v467 = vunpack.c.l.b16 %v460
        %v468 = vunpack.c.h.b16 %v460
        %v469 = vunpack.c.l.b16 %v461
        %v470 = vpack.c.b16 %v465, %v465
        %v471 = vpack.c.b16 %v466, %v466
        %v472 = vpack.c.b16 %v467, %v467
        %v473 = vpack.c.b16 %v468, %v468
        %v474 = vpack.c.b16 %v469, %v469
        %vm475 = vcmask 1041408
        %vm476 = vcmask 1045508
        %vm477 = vmor %vm475, %vm476
        %v478 = vrot.slane %v470, 6
        %v479 = vrot.slane %v478, 4
        %v480 = vrot.slane %v471, 6
        %v481 = vsel %vm477, %v479, %v480
        %v482 = vrot.slane %v480, 4
        %v483 = vrot.slane %v472, 6
        %v484 = vsel %vm477, %v482, %v483
        %v485 = vrot.slane %v483, 4
        %v486 = vrot.slane %v473, 6
        %v487 = vsel %vm477, %v485, %v486
        %v488 = vrot.slane %v486, 4
        %v489 = vrot.slane %v474, 6
        %v490 = vsel %vm477, %v488, %v489
        %v491 = vrot.slane %v489, 4
        %vm497 = vcmask 125952
        %498 = vst.msk [vmem:[#allocation3] sm:$0xf] %vm497, %v481
        %499 = vst.msk [vmem:[#allocation3 + $0x4] sm:$0xf] %vm497, %v484
        %500 = vst.msk [vmem:[#allocation3 + $0x8] sm:$0xf] %vm497, %v487
        %501 = vst.msk [vmem:[#allocation3 + $0xc] sm:$0xf] %vm497, %v490
        %vm502 = vcmask 122880
        %vm503 = vsmask.f32 256
        %vm504 = vmand %vm502, %vm503
        %v505 = vld [vmem:[#allocation3 + $0x10] sm:$0x1]
        %v506 = vsel %vm504, %v491, %v505
        %507 = vst [vmem:[#allocation3 + $0x10] sm:$0x1] %v506
      $region52: #{tpu_custom_call.1} parent=47 // pred_fallthru
        _
      %v508 = vld [vmem:[%s322] sm:$0xff]
      %v509 = vld [vmem:[%s322 + $0x8] sm:$0xff]
      %v510 = vld [vmem:[%s322 + $0x10] sm:$0xff]
      %v511 = vld [vmem:[%s322 + $0x18] sm:$0xff]
      %v512 = vld [vmem:[%s4] sm:$0x3]
      %v513 = vpack.c.bf16 %v509, %v508
      %v514 = vpack.c.bf16 %v511, %v510
      %v515 = vld [vmem:[%s5] sm:$0xf]
      %517 = vset.pattern.permute.xlu0 0
      %518 = vperm.xlu0 %517, %v515
      %v519 = vpop.permute.xlu0 %518
      %vm521 = vcmask 261120
      %v523 = vsel %vm521, %v512, 0
      %525 = vmatprep.subr.bf16.mxu0 0
      %526 = vmatpush1.bf16.msra.mxu0 %v513
      %527 = vmatprep.subr.bf16.mxu0 0
      %528 = vmatpush1.bf16.msra.mxu0 %v514
      %529 = vmatprep.subr.bf16.mxu0 0
      %530 = vmatpush1.bf16.msra.mxu0 0
      %531 = vmatprep.subr.bf16.mxu0 0
      %532 = vmatpush1.bf16.msra.mxu0 0
      %533 = vmatprep.subr.bf16.mxu0 0
      %534 = vmatpush1.bf16.msra.mxu0 0
      %535 = vmatprep.subr.bf16.mxu0 0
      %536 = vmatpush1.bf16.msra.mxu0 0
      %537 = vmatprep.subr.bf16.mxu0 0
      %538 = vmatpush1.bf16.msra.mxu0 0
      %539 = vmatprep.subr.bf16.mxu0 0
      %540 = vmatpush1.bf16.msra.mxu0 0
      %541 = vmatprep.subr.bf16.mxu0 0
      %542 = vmatpush1.bf16.msra.mxu0 0
      %543 = vmatprep.subr.bf16.mxu0 0
      %544 = vmatpush1.bf16.msra.mxu0 0
      %545 = vmatprep.subr.bf16.mxu0 0
      %546 = vmatpush1.bf16.msra.mxu0 0
      %547 = vmatprep.subr.bf16.mxu0 0
      %548 = vmatpush1.bf16.msra.mxu0 0
      %549 = vmatprep.subr.bf16.mxu0 0
      %550 = vmatpush1.bf16.msra.mxu0 0
      %551 = vmatprep.subr.bf16.mxu0 0
      %552 = vmatpush1.bf16.msra.mxu0 0
      %553 = vmatprep.subr.bf16.mxu0 0
      %554 = vmatpush1.bf16.msra.mxu0 0
      %555 = vmatprep.subr.bf16.mxu0 0
      %556 = vmatpush1.bf16.msra.mxu0 0
      %557 = vmatprep.mubr.bf16.mxu0 0
      %558 = vmatmul.mubr.bf16.gmra.mrb[0].mxu0 %v523
      %v559 = vpop.f32.mrb[0].mxu0
      %v560 = vadd.f32 %v519, %v559
      %v561 = vpop.f32.mrb[0].mxu0
      %v562 = vpop.f32.mrb[0].mxu0
      %v563 = vpop.f32.mrb[0].mxu0
      %564 = vdwg.mxu0
      %v565 = vld [vmem:[#allocation2] sm:$0x3]
      %v566 = vpack.c.bf16 %v560, %v560
      %567 = vxpose.xlu0.c.b16.start [1/8] %v565, 128
      %568 = vxpose.xlu0.c.b16.cont [2/8] 0, 128
      %569 = vxpose.xlu0.c.b16.cont [3/8] 0, 128
      %570 = vxpose.xlu0.c.b16.cont [4/8] 0, 128
      %571 = vxpose.xlu0.c.b16.cont [5/8] 0, 128
      %572 = vxpose.xlu0.c.b16.cont [6/8] 0, 128
      %573 = vxpose.xlu0.c.b16.cont [7/8] 0, 128
      %574 = vxpose.xlu0.c.b16.end [8/8] 0, 128
      %v575 = vpop.trf.xlu0
      %v576 = vpop.trf.xlu0
      %v577 = vpop.trf.xlu0
      %v578 = vpop.trf.xlu0
      %v579 = vpop.trf.xlu0
      %v580 = vpop.trf.xlu0
      %v581 = vpop.trf.xlu0
      %v582 = vpop.trf.xlu0
      %vm583 = vcmask 31744
      %v585 = vsel %vm583, %v575, 0
      %vm587 = vcmask 1041408
      %v589 = vsel %vm587, %v566, 0
      %591 = vmatprep.subr.bf16.mxu0 0
      %592 = vmatpush1.bf16.msra.mxu0 %v589
      %593 = vmatprep.subr.bf16.mxu0 0
      %594 = vmatpush1.bf16.msra.mxu0 0
      %595 = vmatprep.subr.bf16.mxu0 0
      %596 = vmatpush1.bf16.msra.mxu0 0
      %597 = vmatprep.subr.bf16.mxu0 0
      %598 = vmatpush1.bf16.msra.mxu0 0
      %599 = vmatprep.subr.bf16.mxu0 0
      %600 = vmatpush1.bf16.msra.mxu0 0
      %601 = vmatprep.subr.bf16.mxu0 0
      %602 = vmatpush1.bf16.msra.mxu0 0
      %603 = vmatprep.subr.bf16.mxu0 0
      %604 = vmatpush1.bf16.msra.mxu0 0
      %605 = vmatprep.subr.bf16.mxu0 0
      %606 = vmatpush1.bf16.msra.mxu0 0
      %607 = vmatprep.subr.bf16.mxu0 0
      %608 = vmatpush1.bf16.msra.mxu0 0
      %609 = vmatprep.subr.bf16.mxu0 0
      %610 = vmatpush1.bf16.msra.mxu0 0
      %611 = vmatprep.subr.bf16.mxu0 0
      %612 = vmatpush1.bf16.msra.mxu0 0
      %613 = vmatprep.subr.bf16.mxu0 0
      %614 = vmatpush1.bf16.msra.mxu0 0
      %615 = vmatprep.subr.bf16.mxu0 0
      %616 = vmatpush1.bf16.msra.mxu0 0
      %617 = vmatprep.subr.bf16.mxu0 0
      %618 = vmatpush1.bf16.msra.mxu0 0
      %619 = vmatprep.subr.bf16.mxu0 0
      %620 = vmatpush1.bf16.msra.mxu0 0
      %621 = vmatprep.subr.bf16.mxu0 0
      %622 = vmatpush1.bf16.msra.mxu0 0
      %623 = vmatprep.mubr.bf16.mxu0 0
      %624 = vmatmul.mubr.bf16.gmra.mrb[0].mxu0 %v585
      %v625 = vpop.f32.mrb[0].mxu0
      %v626 = vadd.f32 0.0, %v625
      %v627 = vpop.f32.mrb[0].mxu0
      %v628 = vpop.f32.mrb[0].mxu0
      %v629 = vadd.f32 0.0, %v628
      %v630 = vpop.f32.mrb[0].mxu0
      %631 = vdwg.mxu0
      %vm632 = vcmask 130048
      %v633 = vsel %vm632, %v626, -inf
      %v634 = vsel %vm632, %v629, -inf
      %v635 = vmax.f32 %v633, %v634
      %v636 = vrot.slane %v635, 4
      %v637 = vmax.f32 %v635, %v636
      %v638 = vrot.slane %v637, 2
      %v639 = vmax.f32 %v637, %v638
      %v640 = vrot.slane %v639, 1
      %v641 = vmax.f32 %v639, %v640
      %v642 = vsub.f32 %v626, %v641
      %v643 = vsub.f32 %v629, %v641
      %v644 = vmul.f32 %v642, 1.442695
      %v645 = vpow.pop %v644
      %v646 = vmul.f32 %v643, 1.442695
      %v647 = vpow.pop %v646
      %v648 = vld [vmem:[#allocation3] sm:$0xf]
      %v649 = vld [vmem:[#allocation3 + $0x4] sm:$0xf]
      %v650 = vld [vmem:[#allocation3 + $0x8] sm:$0xf]
      %v651 = vld [vmem:[#allocation3 + $0xc] sm:$0xf]
      %v652 = vld [vmem:[#allocation3 + $0x10] sm:$0x1]
      %v653 = vpack.c.bf16 %v647, %v645
      %v659 = vunpack.c.l.b16 %v648
      %v660 = vunpack.c.l.b16 %v649
      %v661 = vunpack.c.l.b16 %v650
      %v662 = vunpack.c.l.b16 %v651
      %v663 = vunpack.c.l.b16 %v652
      %v664 = vpack.c.b16 %v660, %v659
      %v665 = vpack.c.b16 %v662, %v661
      %v666 = vpack.c.b16 %v663, %v663
      %v668 = vsel %vm632, %v664, 0
      %v671 = vsel %vm632, %v665, 0
      %v674 = vsel %vm632, %v666, 0
      %676 = vmatprep.subr.bf16.mxu0 0
      %677 = vmatpush1.bf16.msra.mxu0 %v653
      %678 = vmatprep.subr.bf16.mxu0 0
      %679 = vmatpush1.bf16.msra.mxu0 0
      %680 = vmatprep.subr.bf16.mxu0 0
      %681 = vmatpush1.bf16.msra.mxu0 0
      %682 = vmatprep.subr.bf16.mxu0 0
      %683 = vmatpush1.bf16.msra.mxu0 0
      %684 = vmatprep.subr.bf16.mxu0 0
      %685 = vmatpush1.bf16.msra.mxu0 0
      %686 = vmatprep.subr.bf16.mxu0 0
      %687 = vmatpush1.bf16.msra.mxu0 0
      %688 = vmatprep.subr.bf16.mxu0 0
      %689 = vmatpush1.bf16.msra.mxu0 0
      %690 = vmatprep.subr.bf16.mxu0 0
      %691 = vmatpush1.bf16.msra.mxu0 0
      %692 = vmatprep.subr.bf16.mxu0 0
      %693 = vmatpush1.bf16.msra.mxu0 0
      %694 = vmatprep.subr.bf16.mxu0 0
      %695 = vmatpush1.bf16.msra.mxu0 0
      %696 = vmatprep.subr.bf16.mxu0 0
      %697 = vmatpush1.bf16.msra.mxu0 0
      %698 = vmatprep.subr.bf16.mxu0 0
      %699 = vmatpush1.bf16.msra.mxu0 0
      %700 = vmatprep.subr.bf16.mxu0 0
      %701 = vmatpush1.bf16.msra.mxu0 0
      %702 = vmatprep.subr.bf16.mxu0 0
      %703 = vmatpush1.bf16.msra.mxu0 0
      %704 = vmatprep.subr.bf16.mxu0 0
      %705 = vmatpush1.bf16.msra.mxu0 0
      %706 = vmatprep.subr.bf16.mxu0 0
      %707 = vmatpush1.bf16.msra.mxu0 0
      %708 = vmatprep.mubr.bf16.mxu0 0
      %709 = vmatmul.mubr.bf16.gmra.mrb[0].mxu0 %v668
      %v710 = vpop.f32.mrb[0].mxu0
      %v711 = vadd.f32 0.0, %v710
      %v712 = vpop.f32.mrb[0].mxu0
      %v713 = vpop.f32.mrb[0].mxu0
      %v714 = vadd.f32 0.0, %v713
      %v715 = vpop.f32.mrb[0].mxu0
      %716 = vmatprep.mubr.bf16.mxu0 0
      %717 = vmatmul.mubr.bf16.gmra.mrb[0].mxu0 %v671
      %v718 = vpop.f32.mrb[0].mxu0
      %v719 = vadd.f32 0.0, %v718
      %v720 = vpop.f32.mrb[0].mxu0
      %v721 = vpop.f32.mrb[0].mxu0
      %v722 = vadd.f32 0.0, %v721
      %v723 = vpop.f32.mrb[0].mxu0
      %724 = vmatprep.mubr.bf16.mxu0 0
      %725 = vmatmul.mubr.bf16.gmra.mrb[0].mxu0 %v674
      %v726 = vpop.f32.mrb[0].mxu0
      %v727 = vadd.f32 0.0, %v726
      %v728 = vpop.f32.mrb[0].mxu0
      %v729 = vpop.f32.mrb[0].mxu0
      %v730 = vpop.f32.mrb[0].mxu0
      %731 = vdwg.mxu0
      %v732 = vrcp.pop %v727
      %s733 = sld [smem:[#allocation4]]
      %v734 = vstv %s733
      %v735 = vmul.f32 %v734, %v711
      %v736 = vmul.f32 %v734, %v714
      %v737 = vmul.f32 %v734, %v719
      %v738 = vmul.f32 %v734, %v722
      %v739 = vlaneseq
      %v740 = vshrl.u32 %v739, 7
      %v741 = vsub.s32 0, %v740
      %v742 = vrot.slane %v732, %v741
      %v743 = vmul.f32 %v735, %v742
      %v744 = vmul.f32 %v736, %v742
      %v745 = vmul.f32 %v737, %v742
      %v746 = vmul.f32 %v738, %v742
      %v747 = vadd.f32 %v743, %v508
      %v748 = vadd.f32 %v744, %v509
      %v749 = vadd.f32 %v745, %v510
      %v750 = vadd.f32 %v746, %v511
      %751 = vst.msk [vmem:[%s330] sm:$0xff] %vm632, %v747
      %752 = vst.msk [vmem:[%s330 + $0x8] sm:$0xff] %vm632, %v748
      %753 = vst.msk [vmem:[%s330 + $0x10] sm:$0xff] %vm632, %v749
      %754 = vst.msk [vmem:[%s330 + $0x18] sm:$0xff] %vm632, %v750
      %p755 = scmp.lt.s32.totalorder %s23, 1
      %s756 = scalar_select %p755, %s23, 1
      %p757 = scmp.lt.s32.totalorder %s24, 0
      %s758 = scalar_select %p757, %s24, 0
      %s759 = smul.addr %s756, 4
      %s760 = sadd.s32 %s758, %s759
      %s761 = smul.addr %s760, 8
      %s762 = scalar_lea.vmem %s7, %s761
      // Predicated region
      $region53: #{tpu_custom_call.1} parent=47 // pred_check
        %p763 = pneg %p210
      $region54: #{tpu_custom_call.1} parent=47 // pred_check_branch
        %765 = sbr.rel (%p763) target = $region56
      $region55: #{tpu_custom_call.1} parent=47 // pred_region
        _
      $region56: #{tpu_custom_call.1} parent=47 // pred_fallthru
        _
    $region48: #{tpu_custom_call.1} parent=5 // pred_fallthru
      _
    %p766 = scmp.le.s32.totalorder 2, %s14
    // Predicated region
    $region57: #{tpu_custom_call.1} parent=5 // pred_check
      %p767 = pneg %p766
    $region58: #{tpu_custom_call.1} parent=5 // pred_check_branch
      %769 = sbr.rel (%p767) target = $region60
    $region59: #{tpu_custom_call.1} parent=5 // pred_region
      %s770 = ssub.s32 %s14, 2
      // Predicated region
      $region61: #{tpu_custom_call.1} parent=59 // pred_check
        %p771 = pneg %p216
      $region62: #{tpu_custom_call.1} parent=59 // pred_check_branch
        %773 = sbr.rel (%p771) target = $region64
      $region63: #{tpu_custom_call.1} parent=59 // pred_region
        %p774 = scmp.lt.s32.totalorder %s25, 1
        %s775 = scalar_select %p774, %s25, 1
        %p776 = scmp.lt.s32.totalorder %s26, 0
        %s777 = scalar_select %p776, %s26, 0
        %s778 = smul.addr %s775, 4
        %s779 = sadd.s32 %s777, %s778
        %s780 = smul.addr %s779, 8
        %s781 = scalar_lea.vmem %s7, %s780
      $region64: #{tpu_custom_call.1} parent=59 // pred_fallthru
        _
    $region60: #{tpu_custom_call.1} parent=5 // pred_fallthru
      _
  $region6: #{tpu_custom_call.1} parent=0 // loop_footer
    %s18 = sadd.s32 1, %s14
  $region7: #{tpu_custom_call.1} parent=0 // loop_footer_branch
    %13 = sbr.rel target = $region3
  $region8: #{tpu_custom_call.1} parent=0 // loop_exit
    _

</llo_original>
